<compile_context>
chip_gen: v7x
topology: tpu7x:2x2x1
jax: 0.10.0
libtpu: 0.0.40
codegen_flags: <defaults>
</compile_context>

<pallas_src>
import functools
import math

import jax
import jax.numpy as jnp
from jax import lax
from jax.experimental import pallas as pl
from jax.experimental.pallas import tpu as pltpu


def _round_up(a: int, b: int) -> int:
    return (a + b - 1) // b * b


def _physical_vmem_bytes() -> int:
    try:
        return int(pltpu.get_tpu_info().vmem_capacity_bytes)
    except Exception:
        return 64 << 20  # conservative (v7x-sized) default


def _choose_tm(M, C2, C2p, in_bytes, out_bytes, w_bytes, sublane, tm_max,
               vmem_budget):
    """Largest row tile (multiple of sublane) fitting the VMEM budget."""
    # Constant blocks: weight (C2, C2p) + packed gamma/beta (2, C2p) f32.
    fixed_single = C2 * C2p * w_bytes + 2 * C2p * 4               # Buffered(1)
    fixed_double = 2 * (C2 * C2p * w_bytes) + 2 * (2 * C2p * 4)   # fallback
    # Streamed x/out blocks are double-buffered; plus ~3 f32 row-sized
    # intermediates (y, centered, pre-cast output) live inside the kernel.
    per_row = 2 * C2 * in_bytes + 2 * C2p * out_bytes + 3 * C2p * 4
    avail = max(vmem_budget - fixed_single, sublane * per_row)
    tm = min(tm_max, avail // per_row)
    tm = max(sublane, (tm // sublane) * sublane)
    tm = min(tm, _round_up(M, sublane))
    # Keep >= 2 grid steps when possible so the "parallel" row axis can use
    # both TensorCores on v7x (negligible cost on 1-TC v5e/v6e).
    if M > sublane:
        tm = min(tm, _round_up(-(-M // 2), sublane))
    tm = max(tm, sublane)
    vmem_worst = fixed_double + per_row * tm   # covers the fallback buffering
    return int(tm), int(vmem_worst)


def _patch_merge_kernel(x_ref, w_ref, gb_ref, o_ref, *, eps, c_real,
                        compute_dtype):
    # x_ref : (tm, C2)   merged rows, native dtype (f32 or bf16)
    # w_ref : (C2, C2p)  reduction.weight.T, columns zero-padded to C2p
    # gb_ref: (2, C2p)   f32: row 0 = gamma, row 1 = beta (zero on pad lanes)
    # o_ref : (tm, C2p)
    x = x_ref[...]
    if compute_dtype is not None and x.dtype != compute_dtype:
        x = x.astype(compute_dtype)          # in-VMEM VPU cast, no extra HBM pass

    # Linear (no bias): native-dtype operands into the MXU, f32 accumulation.
    y = jnp.dot(x, w_ref[...], preferred_element_type=jnp.float32)

    # LayerNorm over the real channel count (biased variance, eps inside rsqrt
    # -> matches torch.nn.LayerNorm).  Pad lanes of y are exactly zero (zero
    # weight columns), so sum over all lanes / c_real is the correct mean.
    inv_n = 1.0 / c_real
    mean = jnp.sum(y, axis=-1, keepdims=True) * inv_n
    centered = y - mean
    if y.shape[-1] != c_real:
        lane = lax.broadcasted_iota(jnp.int32, y.shape, y.ndim - 1)
        centered_v = jnp.where(lane < c_real, centered, 0.0)
    else:
        centered_v = centered
    var = jnp.sum(centered_v * centered_v, axis=-1, keepdims=True) * inv_n
    inv = lax.rsqrt(var + eps)

    gamma = gb_ref[0:1, :]
    beta = gb_ref[1:2, :]
    o_ref[...] = (centered * inv * gamma + beta).astype(o_ref.dtype)


def patch_merge(x, w_t, gamma, beta, *, eps=1e-5, tm=2048, compute_dtype=None,
                vmem_budget_bytes=None):
    """x: (B, L, C) -> (B, L//2, 2C).

    w_t:   (2C, 2C) = reduction.weight.T
    gamma: (2C,)    = norm.weight
    beta:  (2C,)    = norm.bias
    compute_dtype:  optional matmul dtype (e.g. jnp.bfloat16); LN stays in f32.
    """
    B, L, C = x.shape
    assert L % 2 == 0, "sequence length must be even"
    C2 = 2 * C
    out_dtype = x.dtype

    # even/odd interleave + channel concat of adjacent tokens == reshape.
    M = B * (L // 2)
    xm_flat = x.reshape(M, C2)

    # Lane-dense output: pad the *output* channel axis of the params (never x)
    # up to a multiple of 128.  LN stats inside the kernel use the real C2.
    C2p = _round_up(C2, 128)
    if C2p != C2:
        w_t = jnp.pad(w_t, ((0, 0), (0, C2p - C2)))
        gamma = jnp.pad(gamma, (0, C2p - C2))
        beta = jnp.pad(beta, (0, C2p - C2))
    if compute_dtype is not None:
        w_t = w_t.astype(compute_dtype)      # tiny; activations cast in-kernel
    gb = jnp.stack([gamma, beta], axis=0).astype(jnp.float32)

    in_bytes = jnp.dtype(x.dtype).itemsize
    w_bytes = jnp.dtype(w_t.dtype).itemsize
    out_bytes = jnp.dtype(out_dtype).itemsize
    sublane = 8 if (in_bytes >= 4 and out_bytes >= 4) else 16

    phys_vmem = _physical_vmem_bytes()
    if vmem_budget_bytes is None:
        # ~88 MiB on v5e/v6e (128 MiB physical), ~26 MiB on v7x (64 MiB).
        vmem_budget_bytes = (88 << 20) if phys_vmem >= (100 << 20) else (26 << 20)

    tm_eff, vmem_needed = _choose_tm(M, C2, C2p, in_bytes, out_bytes, w_bytes,
                                     sublane, tm, vmem_budget_bytes)
    n_tiles = pl.cdiv(M, tm_eff)
    vmem_limit = max(vmem_needed + (8 << 20), 32 << 20)
    vmem_limit = int(min(vmem_limit, int(phys_vmem * 0.9)))

    kernel = functools.partial(_patch_merge_kernel, eps=eps, c_real=C2,
                               compute_dtype=compute_dtype)

    def make_call(single_buffer_consts: bool):
        const_kw = (dict(pipeline_mode=pl.Buffered(1))
                    if single_buffer_consts else {})
        return pl.pallas_call(
            kernel,
            out_shape=jax.ShapeDtypeStruct((M, C2p), out_dtype),
            grid_spec=pltpu.PrefetchScalarGridSpec(
                num_scalar_prefetch=0,
                grid=(n_tiles,),
                in_specs=[
                    # TODO(synk): on v7x, bump this x spec to pl.Buffered(3)
                    # only if a profile still shows exposed DMA per step.
                    pl.BlockSpec((tm_eff, C2), lambda i: (i, 0)),
                    # Index-invariant blocks: fetched once, single-buffered.
                    pl.BlockSpec((C2, C2p), lambda i: (0, 0), **const_kw),
                    pl.BlockSpec((2, C2p), lambda i: (0, 0), **const_kw),
                ],
                out_specs=pl.BlockSpec((tm_eff, C2p), lambda i: (i, 0)),
            ),
            compiler_params=pltpu.CompilerParams(
                dimension_semantics=("parallel",),   # rows shard across TCs (v7x)
                vmem_limit_bytes=vmem_limit,
            ),
        )

    try:
        out_flat = make_call(True)(xm_flat, w_t, gb)
    except Exception:
        # pipeline_mode=pl.Buffered(1) unsupported on this JAX/Mosaic version:
        # retry with default double-buffering of the constant blocks.
        out_flat = make_call(False)(xm_flat, w_t, gb)

    if C2p != C2:
        out_flat = out_flat[:, :C2]
    return out_flat.reshape(B, L // 2, C2)


def patch_merge_ref(x, w_t, gamma, beta, eps=1e-5):
    # Mirrors the PyTorch module literally (slice-even / slice-odd / concat).
    x0 = x[:, 0::2, :]
    x1 = x[:, 1::2, :]
    xm = jnp.concatenate([x0, x1], axis=-1).astype(jnp.float32)
    y = xm @ w_t.astype(jnp.float32)
    mean = jnp.mean(y, axis=-1, keepdims=True)
    var = jnp.mean((y - mean) ** 2, axis=-1, keepdims=True)
    out = (y - mean) * lax.rsqrt(var + eps) * gamma + beta
    return out.astype(x.dtype)


if __name__ == "__main__":
    key = jax.random.PRNGKey(0)
    (k_x, k_w, k_g, k_b, k_x2, k_x3, k_w3, k_g3, k_b3) = jax.random.split(key, 9)

    # ---- case 1: C2 multiple of 128 ----
    B, L, dim = 2, 16, 64
    C2 = 2 * dim
    x = jax.random.normal(k_x, (B, L, dim), dtype=jnp.float32)
    bound = 1.0 / math.sqrt(C2)
    W = jax.random.uniform(k_w, (C2, C2), dtype=jnp.float32,
                           minval=-bound, maxval=bound)
    w_t = W.T                      # nn.Linear: y = x @ W.T
    gamma = 1.0 + 0.1 * jax.random.normal(k_g, (C2,), dtype=jnp.float32)
    beta = 0.1 * jax.random.normal(k_b, (C2,), dtype=jnp.float32)

    out = jax.block_until_ready(patch_merge(x, w_t, gamma, beta))
    ref = patch_merge_ref(x, w_t, gamma, beta)
    assert out.shape == (B, L // 2, C2)
    assert jnp.allclose(out, ref, atol=1e-3, rtol=1e-3), "f32 path mismatch"

    # ---- case 2: ragged row count (partial trailing block, no host pad) ----
    B2, L2 = 3, 10                 # M = 15 rows
    x2 = jax.random.normal(k_x2, (B2, L2, dim), dtype=jnp.float32)
    out2 = jax.block_until_ready(patch_merge(x2, w_t, gamma, beta))
    ref2 = patch_merge_ref(x2, w_t, gamma, beta)
    assert out2.shape == (B2, L2 // 2, C2)
    assert jnp.allclose(out2, ref2, atol=1e-3, rtol=1e-3), "ragged-row mismatch"

    # ---- case 3: C2 not a multiple of 128 (dim=48 -> 2C=96): padded lanes ----
    dim3 = 48
    C2_3 = 2 * dim3
    x3 = jax.random.normal(k_x3, (2, 16, dim3), dtype=jnp.float32)
    bound3 = 1.0 / math.sqrt(C2_3)
    W3 = jax.random.uniform(k_w3, (C2_3, C2_3), dtype=jnp.float32,
                            minval=-bound3, maxval=bound3)
    w3_t = W3.T
    gamma3 = 1.0 + 0.1 * jax.random.normal(k_g3, (C2_3,), dtype=jnp.float32)
    beta3 = 0.1 * jax.random.normal(k_b3, (C2_3,), dtype=jnp.float32)
    out3 = jax.block_until_ready(patch_merge(x3, w3_t, gamma3, beta3))
    ref3 = patch_merge_ref(x3, w3_t, gamma3, beta3)
    assert out3.shape == (2, 8, C2_3)
    assert jnp.allclose(out3, ref3, atol=1e-3, rtol=1e-3), "padded-lane mismatch"

    # ---- case 4: bf16 MXU path (activation cast inside the kernel) ----
    out_bf16 = jax.block_until_ready(
        patch_merge(x, w_t, gamma, beta, compute_dtype=jnp.bfloat16))
    assert jnp.allclose(out_bf16, ref, atol=1e-1, rtol=1e-1), "bf16 path mismatch"

    print("KERNEL_OK")
</pallas_src>

<mosaic_0001>
module attributes {stable_mosaic.version = 11 : i64} {
  func.func @_patch_merge_kernel(%arg0: i32, %arg1: memref<8x128xf32, #tpu.memory_space<vmem>>, %arg2: memref<128x128xf32, #tpu.memory_space<vmem>>, %arg3: memref<2x128xf32, #tpu.memory_space<vmem>>, %arg4: memref<8x128xf32, #tpu.memory_space<vmem>>) attributes {dimension_semantics = [#tpu.dimension_semantics<parallel>], iteration_bounds = array<i64: 2>, scalar_prefetch = 0 : i64, scratch_operands = 0 : i64, tpu.core_type = #tpu.core_type<tc>, window_params = [{transform_indices = @transform_0, window_bounds = array<i64: 8, 128>}, {pipeline_mode = #tpu.pipeline_mode<synchronous>, transform_indices = @transform_1, window_bounds = array<i64: 128, 128>}, {pipeline_mode = #tpu.pipeline_mode<synchronous>, transform_indices = @transform_2, window_bounds = array<i64: 2, 128>}, {transform_indices = @transform_3, window_bounds = array<i64: 8, 128>}]} {
    %c0 = arith.constant 0 : index
    %c0_0 = arith.constant 0 : index
    %0 = vector.load %arg1[%c0, %c0_0] : memref<8x128xf32, #tpu.memory_space<vmem>>, vector<8x128xf32>
    %c0_1 = arith.constant 0 : index
    %c0_2 = arith.constant 0 : index
    %1 = vector.load %arg2[%c0_1, %c0_2] : memref<128x128xf32, #tpu.memory_space<vmem>>, vector<128x128xf32>
    %cst = arith.constant dense<0.000000e+00> : vector<8x128xf32>
    %2 = tpu.matmul %0, %1, %cst {dimension_numbers = #tpu.dot_dimension_numbers<[1], [0], [0], [1], [0, 0, 1, 1], [], []>} : vector<8x128xf32>, vector<128x128xf32>, vector<8x128xf32> -> vector<8x128xf32>
    %cst_3 = arith.constant dense<0.000000e+00> : vector<8xf32>
    %3 = vector.multi_reduction <add>, %2, %cst_3 [1] : vector<8x128xf32> to vector<8xf32>
    %4 = vector.shape_cast %3 : vector<8xf32> to vector<8x1xf32>
    %cst_4 = arith.constant 7.812500e-03 : f32
    %5 = vector.broadcast %cst_4 : f32 to vector<8x1xf32>
    %6 = arith.mulf %4, %5 : vector<8x1xf32>
    %7 = vector.broadcast %6 : vector<8x1xf32> to vector<8x128xf32>
    %8 = arith.subf %2, %7 : vector<8x128xf32>
    %9 = arith.mulf %8, %8 : vector<8x128xf32>
    %cst_5 = arith.constant dense<0.000000e+00> : vector<8xf32>
    %10 = vector.multi_reduction <add>, %9, %cst_5 [1] : vector<8x128xf32> to vector<8xf32>
    %11 = vector.shape_cast %10 : vector<8xf32> to vector<8x1xf32>
    %cst_6 = arith.constant 7.812500e-03 : f32
    %12 = vector.broadcast %cst_6 : f32 to vector<8x1xf32>
    %13 = arith.mulf %11, %12 : vector<8x1xf32>
    %cst_7 = arith.constant 9.99999974E-6 : f32
    %14 = vector.broadcast %cst_7 : f32 to vector<8x1xf32>
    %15 = arith.addf %13, %14 : vector<8x1xf32>
    %16 = math.rsqrt %15 : vector<8x1xf32>
    %c0_8 = arith.constant 0 : index
    %c0_9 = arith.constant 0 : index
    %17 = vector.load %arg3[%c0_8, %c0_9] : memref<2x128xf32, #tpu.memory_space<vmem>>, vector<1x128xf32>
    %c1 = arith.constant 1 : index
    %c0_10 = arith.constant 0 : index
    %18 = vector.load %arg3[%c1, %c0_10] : memref<2x128xf32, #tpu.memory_space<vmem>>, vector<1x128xf32>
    %19 = vector.broadcast %16 : vector<8x1xf32> to vector<8x128xf32>
    %20 = arith.mulf %8, %19 : vector<8x128xf32>
    %21 = vector.broadcast %17 : vector<1x128xf32> to vector<8x128xf32>
    %22 = arith.mulf %20, %21 : vector<8x128xf32>
    %23 = vector.broadcast %18 : vector<1x128xf32> to vector<8x128xf32>
    %24 = arith.addf %22, %23 : vector<8x128xf32>
    %c0_11 = arith.constant 0 : index
    %c0_12 = arith.constant 0 : index
    %25 = vector.load %arg4[%c0_11, %c0_12] : memref<8x128xf32, #tpu.memory_space<vmem>>, vector<8x128xf32>
    tpu.vector_store %arg4[%c0_11, %c0_12], %24 {strides = array<i32>} : memref<8x128xf32, #tpu.memory_space<vmem>>, vector<8x128xf32>,
    return
  }
  func.func @transform_0(%arg0: i32) -> (i32, i32) {
    %c0_i32 = arith.constant 0 : i32
    %c0_i32_0 = arith.constant 0 : i32
    return %arg0, %c0_i32 : i32, i32
  }
  func.func @transform_1(%arg0: i32) -> (i32, i32) {
    %c0_i32 = arith.constant 0 : i32
    %c0_i32_0 = arith.constant 0 : i32
    %c0_i32_1 = arith.constant 0 : i32
    return %c0_i32, %c0_i32_0 : i32, i32
  }
  func.func @transform_2(%arg0: i32) -> (i32, i32) {
    %c0_i32 = arith.constant 0 : i32
    %c0_i32_0 = arith.constant 0 : i32
    %c0_i32_1 = arith.constant 0 : i32
    return %c0_i32, %c0_i32_0 : i32, i32
  }
  func.func @transform_3(%arg0: i32) -> (i32, i32) {
    %c0_i32 = arith.constant 0 : i32
    %c0_i32_0 = arith.constant 0 : i32
    return %arg0, %c0_i32 : i32, i32
  }
}

module attributes {stable_mosaic.version = 11 : i64} {
  func.func @_patch_merge_kernel(%arg0: i32, %arg1: memref<8x128xf32, #tpu.memory_space<vmem>>, %arg2: memref<128x128xf32, #tpu.memory_space<vmem>>, %arg3: memref<2x128xf32, #tpu.memory_space<vmem>>, %arg4: memref<8x128xf32, #tpu.memory_space<vmem>>) attributes {dimension_semantics = [#tpu.dimension_semantics<parallel>], iteration_bounds = array<i64: 2>, scalar_prefetch = 0 : i64, scratch_operands = 0 : i64, tpu.core_type = #tpu.core_type<tc>, window_params = [{transform_indices = @transform_0, window_bounds = array<i64: 8, 128>}, {pipeline_mode = #tpu.pipeline_mode<synchronous>, transform_indices = @transform_1, window_bounds = array<i64: 128, 128>}, {pipeline_mode = #tpu.pipeline_mode<synchronous>, transform_indices = @transform_2, window_bounds = array<i64: 2, 128>}, {transform_indices = @transform_3, window_bounds = array<i64: 8, 128>}]} {
    %c0 = arith.constant 0 : index
    %c0_0 = arith.constant 0 : index
    %0 = vector.load %arg1[%c0, %c0_0] : memref<8x128xf32, #tpu.memory_space<vmem>>, vector<8x128xf32>
    %c0_1 = arith.constant 0 : index
    %c0_2 = arith.constant 0 : index
    %1 = vector.load %arg2[%c0_1, %c0_2] : memref<128x128xf32, #tpu.memory_space<vmem>>, vector<128x128xf32>
    %cst = arith.constant dense<0.000000e+00> : vector<8x128xf32>
    %2 = tpu.matmul %0, %1, %cst {dimension_numbers = #tpu.dot_dimension_numbers<[1], [0], [0], [1], [0, 0, 1, 1], [], []>} : vector<8x128xf32>, vector<128x128xf32>, vector<8x128xf32> -> vector<8x128xf32>
    %cst_3 = arith.constant dense<0.000000e+00> : vector<8xf32>
    %3 = vector.multi_reduction <add>, %2, %cst_3 [1] : vector<8x128xf32> to vector<8xf32>
    %4 = vector.shape_cast %3 : vector<8xf32> to vector<8x1xf32>
    %cst_4 = arith.constant 7.812500e-03 : f32
    %5 = vector.broadcast %cst_4 : f32 to vector<8x1xf32>
    %6 = arith.mulf %4, %5 : vector<8x1xf32>
    %7 = vector.broadcast %6 : vector<8x1xf32> to vector<8x128xf32>
    %8 = arith.subf %2, %7 : vector<8x128xf32>
    %9 = arith.mulf %8, %8 : vector<8x128xf32>
    %cst_5 = arith.constant dense<0.000000e+00> : vector<8xf32>
    %10 = vector.multi_reduction <add>, %9, %cst_5 [1] : vector<8x128xf32> to vector<8xf32>
    %11 = vector.shape_cast %10 : vector<8xf32> to vector<8x1xf32>
    %cst_6 = arith.constant 7.812500e-03 : f32
    %12 = vector.broadcast %cst_6 : f32 to vector<8x1xf32>
    %13 = arith.mulf %11, %12 : vector<8x1xf32>
    %cst_7 = arith.constant 9.99999974E-6 : f32
    %14 = vector.broadcast %cst_7 : f32 to vector<8x1xf32>
    %15 = arith.addf %13, %14 : vector<8x1xf32>
    %16 = math.rsqrt %15 : vector<8x1xf32>
    %c0_8 = arith.constant 0 : index
    %c0_9 = arith.constant 0 : index
    %17 = vector.load %arg3[%c0_8, %c0_9] : memref<2x128xf32, #tpu.memory_space<vmem>>, vector<1x128xf32>
    %c1 = arith.constant 1 : index
    %c0_10 = arith.constant 0 : index
    %18 = vector.load %arg3[%c1, %c0_10] : memref<2x128xf32, #tpu.memory_space<vmem>>, vector<1x128xf32>
    %19 = vector.broadcast %16 : vector<8x1xf32> to vector<8x128xf32>
    %20 = arith.mulf %8, %19 : vector<8x128xf32>
    %21 = vector.broadcast %17 : vector<1x128xf32> to vector<8x128xf32>
    %22 = arith.mulf %20, %21 : vector<8x128xf32>
    %23 = vector.broadcast %18 : vector<1x128xf32> to vector<8x128xf32>
    %24 = arith.addf %22, %23 : vector<8x128xf32>
    %c0_11 = arith.constant 0 : index
    %c0_12 = arith.constant 0 : index
    %25 = vector.load %arg4[%c0_11, %c0_12] : memref<8x128xf32, #tpu.memory_space<vmem>>, vector<8x128xf32>
    tpu.vector_store %arg4[%c0_11, %c0_12], %24 {strides = array<i32>} : memref<8x128xf32, #tpu.memory_space<vmem>>, vector<8x128xf32>,
    return
  }
  func.func @transform_0(%arg0: i32) -> (i32, i32) {
    %c0_i32 = arith.constant 0 : i32
    %c0_i32_0 = arith.constant 0 : i32
    return %arg0, %c0_i32 : i32, i32
  }
  func.func @transform_1(%arg0: i32) -> (i32, i32) {
    %c0_i32 = arith.constant 0 : i32
    %c0_i32_0 = arith.constant 0 : i32
    %c0_i32_1 = arith.constant 0 : i32
    return %c0_i32, %c0_i32_0 : i32, i32
  }
  func.func @transform_2(%arg0: i32) -> (i32, i32) {
    %c0_i32 = arith.constant 0 : i32
    %c0_i32_0 = arith.constant 0 : i32
    %c0_i32_1 = arith.constant 0 : i32
    return %c0_i32, %c0_i32_0 : i32, i32
  }
  func.func @transform_3(%arg0: i32) -> (i32, i32) {
    %c0_i32 = arith.constant 0 : i32
    %c0_i32_0 = arith.constant 0 : i32
    return %arg0, %c0_i32 : i32, i32
  }
}

</mosaic_0001>

<llo_original>
// kernel: tpu_custom_call.1
$region0: #{tpu_custom_call.1}
  #allocation0 [shape = 'u32[]', space=smem, size = 0x4, offset = 0x4, fixed_abs, tag = 'smem constant byte address 0x4 - core index']
  #allocation1 [shape = 'u32[144,128]{1,0:T(1,128)}', space=vmem, size = 0x12000, scoped, tag = 'internal scratch']
  %s0 = inlined_call_operand.hbm [shape: f32[16,128], index: 0, kind: input, shape index: {}]
  %s1 = inlined_call_operand.hbm [shape: f32[128,128], index: 1, kind: input, shape index: {}]
  %s2 = inlined_call_operand.vmem [shape: f32[2,128], index: 2, kind: input, shape index: {}]
  %s3 = inlined_call_operand.hbm [shape: f32[16,128], index: 3, kind: output, shape index: {}]
  %s4 = sld [smem:[#allocation0]]
  $region53: #{tpu_custom_call.1} parent=0
    _
  %s6 = ssub.s32 1, %s4
  %s7 = scalar_select 0, %s6, %s4
  $region1: #{tpu_custom_call.1} parent=0
    #allocation2 [shape = 'u8[8192]{0}', space=vmem, size = 0x2000, scoped, tag = 'input window, operand 0']
    #allocation3 [shape = 's32[2]{0}', space=sflag, size = 0x8, scoped, tag = 'scoped memory for tpu_custom_call.1']
    #allocation4 [shape = 's32[2]{0}', space=sflag, size = 0x8, scoped, tag = 'scoped memory for tpu_custom_call.1']
    #allocation5 [shape = 'u8[65536]{0}', space=vmem, size = 0x10000, scoped, tag = 'input window, operand 1, single buffered']
    #allocation6 [shape = 's32[1]{0}', space=sflag, size = 0x4, scoped, tag = 'scoped memory for tpu_custom_call.1']
    #allocation7 [shape = 'u8[8192]{0}', space=vmem, size = 0x2000, scoped, tag = 'output window, operand 0']
    %8 = vsyncpa [#allocation3], 0
    %s9 = scalar_lea.sflag [#allocation3], 1
    %10 = vsyncpa %s9, 0
    %11 = vsyncpa [#allocation6], 0
    %12 = vsyncpa [#allocation4], 0
    %s13 = scalar_lea.sflag [#allocation4], 1
    %14 = vsyncpa %s13, 0
    loop: start=0, step=1, limit=4
    $region2: #{tpu_custom_call.1} parent=1 // loop_pre_header
      _
    $region3: #{tpu_custom_call.1} parent=1 // loop_header
      %s16 = sphi 0, %s20
      %p17 = scmp.ge.s32.totalorder %s16, 4
      %s26 = sphi 0, %s28
      %s29 = sphi 0, %s26
      %s30 = sphi 0, %s29
      %s46 = sphi 0, %s30
      %s50 = sphi 0, %s50
      %s52 = sphi 0, %s50
      %s53 = sphi 0, %s52
      %s67 = sphi 0, %s53
      %s71 = sphi 0, %s71
      %s73 = sphi 0, %s71
      %s74 = sphi 0, %s73
      %s88 = sphi 0, %s74
      %s94 = sphi 0, %s96
      %s97 = sphi 0, %s94
      %s98 = sphi 0, %s97
      %s114 = sphi 0, %s98
    $region4: #{tpu_custom_call.1} parent=1 // loop_header_branch
      %19 = sbr.rel (%p17) target = $region8
    $region5: #{tpu_custom_call.1} parent=1 // loop_body
      %s21 = ssub.s32 %s16, 1
      %s22 = ssub.s32 %s16, 2
      %s23 = sadd.s32 %s16, 1
      %s24 = ssub.s32 %s16, %s23
      %p25 = scmp.eq.s32.totalorder %s24, 0
      %s27 = sadd.s32 %s26, 1
      %s28 = scalar_select %p25, %s26, %s27
      %p31 = pneg %p25
      %p32 = scmp.eq.s32.totalorder %s16, 1
      %p33 = por %p31, %p32
      %p34 = scmp.ne.s32.totalorder %s26, %s29
      %p35 = scmp.eq.s32.totalorder %s16, 0
      %p36 = por %p34, %p35
      %p37 = scmp.ne.s32.totalorder %s26, %s29
      %p38 = scmp.eq.s32.totalorder %s21, 1
      %p39 = por %p37, %p38
      %p40 = scmp.ne.s32.totalorder %s29, %s30
      %p41 = scmp.eq.s32.totalorder %s21, 0
      %p42 = por %p40, %p41
      %p43 = scmp.ne.s32.totalorder %s29, %s30
      %p44 = scmp.eq.s32.totalorder %s22, 1
      %p45 = por %p43, %p44
      %p47 = scmp.ne.s32.totalorder %s30, %s46
      %p48 = scmp.eq.s32.totalorder %s22, 0
      %p49 = por %p47, %p48
      %s51 = sadd.s32 %s50, 1
      %p54 = scmp.eq.s32.totalorder %s16, 1
      %p55 = scmp.ne.s32.totalorder %s50, %s52
      %p56 = scmp.eq.s32.totalorder %s16, 0
      %p57 = por %p55, %p56
      %p58 = scmp.ne.s32.totalorder %s50, %s52
      %p59 = scmp.eq.s32.totalorder %s21, 1
      %p60 = por %p58, %p59
      %p61 = scmp.ne.s32.totalorder %s52, %s53
      %p62 = scmp.eq.s32.totalorder %s21, 0
      %p63 = por %p61, %p62
      %p64 = scmp.ne.s32.totalorder %s52, %s53
      %p65 = scmp.eq.s32.totalorder %s22, 1
      %p66 = por %p64, %p65
      %p68 = scmp.ne.s32.totalorder %s53, %s67
      %p69 = scmp.eq.s32.totalorder %s22, 0
      %p70 = por %p68, %p69
      %s72 = sadd.s32 %s71, 1
      %p75 = scmp.eq.s32.totalorder %s16, 1
      %p76 = scmp.ne.s32.totalorder %s71, %s73
      %p77 = scmp.eq.s32.totalorder %s16, 0
      %p78 = por %p76, %p77
      %p79 = scmp.ne.s32.totalorder %s71, %s73
      %p80 = scmp.eq.s32.totalorder %s21, 1
      %p81 = por %p79, %p80
      %p82 = scmp.ne.s32.totalorder %s73, %s74
      %p83 = scmp.eq.s32.totalorder %s21, 0
      %p84 = por %p82, %p83
      %p85 = scmp.ne.s32.totalorder %s73, %s74
      %p86 = scmp.eq.s32.totalorder %s22, 1
      %p87 = por %p85, %p86
      %p89 = scmp.ne.s32.totalorder %s74, %s88
      %p90 = scmp.eq.s32.totalorder %s22, 0
      %p91 = por %p89, %p90
      %s92 = ssub.s32 %s16, %s23
      %p93 = scmp.eq.s32.totalorder %s92, 0
      %s95 = sadd.s32 %s94, 1
      %s96 = scalar_select %p93, %s94, %s95
      %p99 = pneg %p93
      %p100 = scmp.eq.s32.totalorder %s16, 1
      %p101 = por %p99, %p100
      %p102 = scmp.ne.s32.totalorder %s94, %s97
      %p103 = scmp.eq.s32.totalorder %s16, 0
      %p104 = por %p102, %p103
      %p105 = scmp.ne.s32.totalorder %s94, %s97
      %p106 = scmp.eq.s32.totalorder %s21, 1
      %p107 = por %p105, %p106
      %p108 = scmp.ne.s32.totalorder %s97, %s98
      %p109 = scmp.eq.s32.totalorder %s21, 0
      %p110 = por %p108, %p109
      %p111 = scmp.ne.s32.totalorder %s97, %s98
      %p112 = scmp.eq.s32.totalorder %s22, 1
      %p113 = por %p111, %p112
      %p115 = scmp.ne.s32.totalorder %s98, %s114
      %p116 = scmp.eq.s32.totalorder %s22, 0
      %p117 = por %p115, %p116
      %p118 = scmp.le.s32.totalorder 1, %s16
      %p119 = scmp.lt.s32.totalorder %s16, 3
      %p120 = pnand %p118, %p119
      %p121 = pneg %p120
      // Predicated region
      $region9: #{tpu_custom_call.1} parent=5 // pred_check
        _
      $region10: #{tpu_custom_call.1} parent=5 // pred_check_branch
        %123 = sbr.rel (%p120) target = $region12
      $region11: #{tpu_custom_call.1} parent=5 // pred_region
        %s124 = ssub.s32 %s16, 1
        // Predicated region
        $region13: #{tpu_custom_call.1} parent=11 // pred_check
          %p125 = pneg %p63
        $region14: #{tpu_custom_call.1} parent=11 // pred_check_branch
          %127 = sbr.rel (%p125) target = $region16
        $region15: #{tpu_custom_call.1} parent=11 // pred_region
          %s129 = ssub.s32 2048, 2048
          %130 = vsyncadd [#allocation6], %s129
          %s131 = sshll.u32 [#allocation5], 4
          %s132 = int_to_ptr.vmem [resolvable:$true] %s131
          %137 = dma.hbm_to_vmem [thread:$0]  %s1, 2048, %s132, [#allocation6], 128, 128, 8
        $region16: #{tpu_custom_call.1} parent=11 // pred_fallthru
          _
        // Predicated region
        $region17: #{tpu_custom_call.1} parent=11 // pred_check
          %p138 = pneg %p84
        $region18: #{tpu_custom_call.1} parent=11 // pred_check_branch
          %140 = sbr.rel (%p138) target = $region20
        $region19: #{tpu_custom_call.1} parent=11 // pred_region
          _
        $region20: #{tpu_custom_call.1} parent=11 // pred_fallthru
          _
      $region12: #{tpu_custom_call.1} parent=5 // pred_fallthru
        _
      %p141 = scmp.lt.s32.totalorder %s16, 2
      // Predicated region
      $region21: #{tpu_custom_call.1} parent=5 // pred_check
        %p142 = pneg %p141
      $region22: #{tpu_custom_call.1} parent=5 // pred_check_branch
        %144 = sbr.rel (%p142) target = $region24
      $region23: #{tpu_custom_call.1} parent=5 // pred_region
        // Predicated region
        $region25: #{tpu_custom_call.1} parent=23 // pred_check
          %p145 = pneg %p36
        $region26: #{tpu_custom_call.1} parent=23 // pred_check_branch
          %147 = sbr.rel (%p145) target = $region28
        $region27: #{tpu_custom_call.1} parent=23 // pred_region
          %s148 = sand.u32 %s26, 1
          %s149 = scalar_lea.sflag [#allocation3], %s148
          %s150 = sand.u32 %s26, 1
          %s151 = smul.addr %s150, 8
          %s152 = scalar_lea.vmem [#allocation2], %s151
          %s154 = ssub.s32 128, 128
          %155 = vsyncadd %s149, %s154
          %s156 = smul.addr %s16, 128
          %s157 = scalar_lea.hbm %s0, %s156
          %s159 = sshll.u32 %s152, 4
          %s160 = int_to_ptr.vmem [resolvable:$true] %s159
          %162 = dma.hbm_to_vmem [thread:$0]  %s157, 128, %s160, %s149
        $region28: #{tpu_custom_call.1} parent=23 // pred_fallthru
          _
      $region24: #{tpu_custom_call.1} parent=5 // pred_fallthru
        _
      %p163 = scmp.le.s32.totalorder 1, %s16
      %p164 = scmp.lt.s32.totalorder %s16, 3
      %p165 = pnand %p163, %p164
      %p166 = pneg %p165
      // Predicated region
      $region29: #{tpu_custom_call.1} parent=5 // pred_check
        _
      $region30: #{tpu_custom_call.1} parent=5 // pred_check_branch
        %168 = sbr.rel (%p165) target = $region32
      $region31: #{tpu_custom_call.1} parent=5 // pred_region
        %s169 = ssub.s32 %s16, 1
        %s170 = sand.u32 %s29, 1
        %s171 = scalar_lea.sflag [#allocation3], %s170
        %s172 = sand.u32 %s29, 1
        %s173 = smul.addr %s172, 8
        %s174 = scalar_lea.vmem [#allocation2], %s173
        // Predicated region
        $region33: #{tpu_custom_call.1} parent=31 // pred_check
          %p175 = pneg %p42
        $region34: #{tpu_custom_call.1} parent=31 // pred_check_branch
          %177 = sbr.rel (%p175) target = $region36
        $region35: #{tpu_custom_call.1} parent=31 // pred_region
          %178 = dma.done %s171, 128
        $region36: #{tpu_custom_call.1} parent=31 // pred_fallthru
          _
        // Predicated region
        $region37: #{tpu_custom_call.1} parent=31 // pred_check
          %p179 = pneg %p63
        $region38: #{tpu_custom_call.1} parent=31 // pred_check_branch
          %181 = sbr.rel (%p179) target = $region40
        $region39: #{tpu_custom_call.1} parent=31 // pred_region
          %182 = dma.done [#allocation6], 2048
        $region40: #{tpu_custom_call.1} parent=31 // pred_fallthru
          _
        %s183 = sand.u32 %s29, 1
        %s184 = scalar_lea.sflag [#allocation3], %s183
        %s185 = sand.u32 %s29, 1
        %s186 = smul.addr %s185, 8
        %s187 = scalar_lea.vmem [#allocation2], %s186
        %p188 = pneg %p42
        %p189 = pneg %p39
        %p190 = pneg %p63
        %p191 = pneg %p60
        %p192 = pneg %p84
        %p193 = pneg %p81
        %p194 = pneg %p110
        %p195 = pneg %p107
        %s196 = sand.u32 %s97, 1
        %s197 = scalar_lea.sflag [#allocation4], %s196
        %s198 = sand.u32 %s97, 1
        %s199 = smul.addr %s198, 8
        %s200 = scalar_lea.vmem [#allocation7], %s199
        %v201 = vld [vmem:[%s174] sm:$0xff]
        %v202 = vld [vmem:[#allocation5] sm:$0xff]
        %v203 = vld [vmem:[#allocation5 + $0x8] sm:$0xff]
        %v204 = vld [vmem:[#allocation5 + $0x10] sm:$0xff]
        %v205 = vld [vmem:[#allocation5 + $0x18] sm:$0xff]
        %v206 = vld [vmem:[#allocation5 + $0x20] sm:$0xff]
        %v207 = vld [vmem:[#allocation5 + $0x28] sm:$0xff]
        %v208 = vld [vmem:[#allocation5 + $0x30] sm:$0xff]
        %v209 = vld [vmem:[#allocation5 + $0x38] sm:$0xff]
        %v210 = vld [vmem:[#allocation5 + $0x40] sm:$0xff]
        %v211 = vld [vmem:[#allocation5 + $0x48] sm:$0xff]
        %v212 = vld [vmem:[#allocation5 + $0x50] sm:$0xff]
        %v213 = vld [vmem:[#allocation5 + $0x58] sm:$0xff]
        %v214 = vld [vmem:[#allocation5 + $0x60] sm:$0xff]
        %v215 = vld [vmem:[#allocation5 + $0x68] sm:$0xff]
        %v216 = vld [vmem:[#allocation5 + $0x70] sm:$0xff]
        %v217 = vld [vmem:[#allocation5 + $0x78] sm:$0xff]
        %218 = vmatprep.subr.mxu0 0.0
        %219 = vmatpush1.msra.mxu0 %v202
        %220 = vmatprep.subr.mxu0 0.0
        %221 = vmatpush1.msra.mxu0 %v203
        %222 = vmatprep.subr.mxu0 0.0
        %223 = vmatpush1.msra.mxu0 %v204
        %224 = vmatprep.subr.mxu0 0.0
        %225 = vmatpush1.msra.mxu0 %v205
        %226 = vmatprep.subr.mxu0 0.0
        %227 = vmatpush1.msra.mxu0 %v206
        %228 = vmatprep.subr.mxu0 0.0
        %229 = vmatpush1.msra.mxu0 %v207
        %230 = vmatprep.subr.mxu0 0.0
        %231 = vmatpush1.msra.mxu0 %v208
        %232 = vmatprep.subr.mxu0 0.0
        %233 = vmatpush1.msra.mxu0 %v209
        %234 = vmatprep.subr.mxu0 0.0
        %235 = vmatpush1.msra.mxu0 %v210
        %236 = vmatprep.subr.mxu0 0.0
        %237 = vmatpush1.msra.mxu0 %v211
        %238 = vmatprep.subr.mxu0 0.0
        %239 = vmatpush1.msra.mxu0 %v212
        %240 = vmatprep.subr.mxu0 0.0
        %241 = vmatpush1.msra.mxu0 %v213
        %242 = vmatprep.subr.mxu0 0.0
        %243 = vmatpush1.msra.mxu0 %v214
        %244 = vmatprep.subr.mxu0 0.0
        %245 = vmatpush1.msra.mxu0 %v215
        %246 = vmatprep.subr.mxu0 0.0
        %247 = vmatpush1.msra.mxu0 %v216
        %248 = vmatprep.subr.mxu0 0.0
        %249 = vmatpush1.msra.mxu0 %v217
        %250 = vmatprep.subr.mxu0 0.0
        %251 = vmatpush1.msra.mxu0 0.0
        %252 = vmatprep.subr.mxu0 0.0
        %253 = vmatpush1.msra.mxu0 0.0
        %254 = vmatprep.subr.mxu0 0.0
        %255 = vmatpush1.msra.mxu0 0.0
        %256 = vmatprep.subr.mxu0 0.0
        %257 = vmatpush1.msra.mxu0 0.0
        %258 = vmatprep.subr.mxu0 0.0
        %259 = vmatpush1.msra.mxu0 0.0
        %260 = vmatprep.subr.mxu0 0.0
        %261 = vmatpush1.msra.mxu0 0.0
        %262 = vmatprep.subr.mxu0 0.0
        %263 = vmatpush1.msra.mxu0 0.0
        %264 = vmatprep.subr.mxu0 0.0
        %265 = vmatpush1.msra.mxu0 0.0
        %266 = vmatprep.subr.mxu0 0.0
        %267 = vmatpush1.msra.mxu0 0.0
        %268 = vmatprep.subr.mxu0 0.0
        %269 = vmatpush1.msra.mxu0 0.0
        %270 = vmatprep.subr.mxu0 0.0
        %271 = vmatpush1.msra.mxu0 0.0
        %272 = vmatprep.subr.mxu0 0.0
        %273 = vmatpush1.msra.mxu0 0.0
        %274 = vmatprep.subr.mxu0 0.0
        %275 = vmatpush1.msra.mxu0 0.0
        %276 = vmatprep.subr.mxu0 0.0
        %277 = vmatpush1.msra.mxu0 0.0
        %278 = vmatprep.subr.mxu0 0.0
        %279 = vmatpush1.msra.mxu0 0.0
        %280 = vmatprep.subr.mxu0 0.0
        %281 = vmatpush1.msra.mxu0 0.0
        %282 = vmatprep.mubr.f32.mxu0 0.0
        %283 = vmatmul.mubr.f32.gmra.mrb[0].mxu0 %v201
        %v284 = vpop.f32.mrb[0].mxu0
        %v285 = vadd.f32 0.0, %v284
        %v286 = vpop.f32.mrb[0].mxu0
        %287 = vdwg.mxu0
        %288 = vadd.xlane.f32.xlu0 %v285
        %v289 = vpop.xlane.xlu0 %288
        %v290 = vmul.f32 %v289, 0.0078125
        %v291 = vsub.f32 %v285, %v290
        %v292 = vmul.f32 %v291, %v291
        %293 = vadd.xlane.f32.xlu0 %v292
        %v294 = vpop.xlane.xlu0 %293
        %v295 = vmul.f32 %v294, 0.0078125
        %v296 = vadd.f32 %v295, 1e-05
        %v297 = vrsqrt.pop %v296
        %v298 = vld [vmem:[%s2] sm:$0x1]
        %v299 = vld [vmem:[%s2 + $0x1] sm:$0x1]
        %v300 = vmul.f32 %v291, %v297
        %v301 = vlaneseq
        %v302 = vshrl.u32 %v301, 7
        %v303 = vsub.s32 0, %v302
        %v304 = vrot.slane %v298, %v303
        %v305 = vmul.f32 %v300, %v304
        %v306 = vlaneseq
        %v307 = vshrl.u32 %v306, 7
        %v308 = vsub.s32 0, %v307
        %v309 = vrot.slane %v299, %v308
        %v310 = vadd.f32 %v305, %v309
        %311 = vst [vmem:[%s200] sm:$0xff] %v310
        %s312 = sand.u32 %s97, 1
        %s313 = scalar_lea.sflag [#allocation4], %s312
        %s314 = sand.u32 %s97, 1
        %s315 = smul.addr %s314, 8
        %s316 = scalar_lea.vmem [#allocation7], %s315
        // Predicated region
        $region41: #{tpu_custom_call.1} parent=31 // pred_check
          %p317 = pneg %p107
        $region42: #{tpu_custom_call.1} parent=31 // pred_check_branch
          %319 = sbr.rel (%p317) target = $region44
        $region43: #{tpu_custom_call.1} parent=31 // pred_region
          %s321 = ssub.s32 128, 128
          %322 = vsyncadd %s313, %s321
          %s323 = smul.addr %s21, 128
          %s324 = scalar_lea.hbm %s3, %s323
          %s326 = sshll.u32 %s316, 4
          %s327 = int_to_ptr.vmem [resolvable:$true] %s326
          %329 = dma.vmem_to_hbm [thread:$0]  %s327, 128, %s324, %s313
        $region44: #{tpu_custom_call.1} parent=31 // pred_fallthru
          _
      $region32: #{tpu_custom_call.1} parent=5 // pred_fallthru
        _
      %p330 = scmp.le.s32.totalorder 2, %s16
      // Predicated region
      $region45: #{tpu_custom_call.1} parent=5 // pred_check
        %p331 = pneg %p330
      $region46: #{tpu_custom_call.1} parent=5 // pred_check_branch
        %333 = sbr.rel (%p331) target = $region48
      $region47: #{tpu_custom_call.1} parent=5 // pred_region
        %s334 = ssub.s32 %s16, 2
        // Predicated region
        $region49: #{tpu_custom_call.1} parent=47 // pred_check
          %p335 = pneg %p113
        $region50: #{tpu_custom_call.1} parent=47 // pred_check_branch
          %337 = sbr.rel (%p335) target = $region52
        $region51: #{tpu_custom_call.1} parent=47 // pred_region
          %s338 = sand.u32 %s98, 1
          %s339 = scalar_lea.sflag [#allocation4], %s338
          %s340 = sand.u32 %s98, 1
          %s341 = smul.addr %s340, 8
          %s342 = scalar_lea.vmem [#allocation7], %s341
          %343 = dma.done %s339, 128
        $region52: #{tpu_custom_call.1} parent=47 // pred_fallthru
          _
      $region48: #{tpu_custom_call.1} parent=5 // pred_fallthru
        _
    $region6: #{tpu_custom_call.1} parent=1 // loop_footer
      %s20 = sadd.s32 1, %s16
    $region7: #{tpu_custom_call.1} parent=1 // loop_footer_branch
      %15 = sbr.rel target = $region3
    $region8: #{tpu_custom_call.1} parent=1 // loop_exit
      _
    %344 = vsyncpa [#allocation3], 1
    %s345 = scalar_lea.sflag [#allocation3], 1
    %346 = vsyncpa %s345, 1
    %347 = vsyncpa [#allocation6], 1
    %348 = vsyncpa [#allocation4], 1
    %s349 = scalar_lea.sflag [#allocation4], 1
    %350 = vsyncpa %s349, 1

// kernel: tpu_custom_call.1
$region0: #{tpu_custom_call.1}
  #allocation0 [shape = 'u32[]', space=smem, size = 0x4, offset = 0x4, fixed_abs, tag = 'smem constant byte address 0x4 - core index']
  #allocation1 [shape = 'u32[144,128]{1,0:T(1,128)}', space=vmem, size = 0x12000, scoped, tag = 'internal scratch']
  %s0 = inlined_call_operand.hbm [shape: f32[16,128], index: 0, kind: input, shape index: {}]
  %s1 = inlined_call_operand.hbm [shape: f32[128,128], index: 1, kind: input, shape index: {}]
  %s2 = inlined_call_operand.vmem [shape: f32[2,128], index: 2, kind: input, shape index: {}]
  %s3 = inlined_call_operand.hbm [shape: f32[16,128], index: 3, kind: output, shape index: {}]
  %s4 = sld [smem:[#allocation0]]
  $region53: #{tpu_custom_call.1} parent=0
    _
  %s6 = ssub.s32 1, %s4
  %s7 = scalar_select 0, %s6, %s4
  $region1: #{tpu_custom_call.1} parent=0
    #allocation2 [shape = 'u8[8192]{0}', space=vmem, size = 0x2000, scoped, tag = 'input window, operand 0']
    #allocation3 [shape = 's32[2]{0}', space=sflag, size = 0x8, scoped, tag = 'scoped memory for tpu_custom_call.1']
    #allocation4 [shape = 's32[2]{0}', space=sflag, size = 0x8, scoped, tag = 'scoped memory for tpu_custom_call.1']
    #allocation5 [shape = 'u8[65536]{0}', space=vmem, size = 0x10000, scoped, tag = 'input window, operand 1, single buffered']
    #allocation6 [shape = 's32[1]{0}', space=sflag, size = 0x4, scoped, tag = 'scoped memory for tpu_custom_call.1']
    #allocation7 [shape = 'u8[8192]{0}', space=vmem, size = 0x2000, scoped, tag = 'output window, operand 0']
    %8 = vsyncpa [#allocation3], 0
    %s9 = scalar_lea.sflag [#allocation3], 1
    %10 = vsyncpa %s9, 0
    %11 = vsyncpa [#allocation6], 0
    %12 = vsyncpa [#allocation4], 0
    %s13 = scalar_lea.sflag [#allocation4], 1
    %14 = vsyncpa %s13, 0
    loop: start=0, step=1, limit=4
    $region2: #{tpu_custom_call.1} parent=1 // loop_pre_header
      _
    $region3: #{tpu_custom_call.1} parent=1 // loop_header
      %s16 = sphi 0, %s20
      %p17 = scmp.ge.s32.totalorder %s16, 4
      %s26 = sphi 0, %s28
      %s29 = sphi 0, %s26
      %s30 = sphi 0, %s29
      %s46 = sphi 0, %s30
      %s50 = sphi 0, %s50
      %s52 = sphi 0, %s50
      %s53 = sphi 0, %s52
      %s67 = sphi 0, %s53
      %s71 = sphi 0, %s71
      %s73 = sphi 0, %s71
      %s74 = sphi 0, %s73
      %s88 = sphi 0, %s74
      %s94 = sphi 0, %s96
      %s97 = sphi 0, %s94
      %s98 = sphi 0, %s97
      %s114 = sphi 0, %s98
    $region4: #{tpu_custom_call.1} parent=1 // loop_header_branch
      %19 = sbr.rel (%p17) target = $region8
    $region5: #{tpu_custom_call.1} parent=1 // loop_body
      %s21 = ssub.s32 %s16, 1
      %s22 = ssub.s32 %s16, 2
      %s23 = sadd.s32 %s16, 1
      %s24 = ssub.s32 %s16, %s23
      %p25 = scmp.eq.s32.totalorder %s24, 0
      %s27 = sadd.s32 %s26, 1
      %s28 = scalar_select %p25, %s26, %s27
      %p31 = pneg %p25
      %p32 = scmp.eq.s32.totalorder %s16, 1
      %p33 = por %p31, %p32
      %p34 = scmp.ne.s32.totalorder %s26, %s29
      %p35 = scmp.eq.s32.totalorder %s16, 0
      %p36 = por %p34, %p35
      %p37 = scmp.ne.s32.totalorder %s26, %s29
      %p38 = scmp.eq.s32.totalorder %s21, 1
      %p39 = por %p37, %p38
      %p40 = scmp.ne.s32.totalorder %s29, %s30
      %p41 = scmp.eq.s32.totalorder %s21, 0
      %p42 = por %p40, %p41
      %p43 = scmp.ne.s32.totalorder %s29, %s30
      %p44 = scmp.eq.s32.totalorder %s22, 1
      %p45 = por %p43, %p44
      %p47 = scmp.ne.s32.totalorder %s30, %s46
      %p48 = scmp.eq.s32.totalorder %s22, 0
      %p49 = por %p47, %p48
      %s51 = sadd.s32 %s50, 1
      %p54 = scmp.eq.s32.totalorder %s16, 1
      %p55 = scmp.ne.s32.totalorder %s50, %s52
      %p56 = scmp.eq.s32.totalorder %s16, 0
      %p57 = por %p55, %p56
      %p58 = scmp.ne.s32.totalorder %s50, %s52
      %p59 = scmp.eq.s32.totalorder %s21, 1
      %p60 = por %p58, %p59
      %p61 = scmp.ne.s32.totalorder %s52, %s53
      %p62 = scmp.eq.s32.totalorder %s21, 0
      %p63 = por %p61, %p62
      %p64 = scmp.ne.s32.totalorder %s52, %s53
      %p65 = scmp.eq.s32.totalorder %s22, 1
      %p66 = por %p64, %p65
      %p68 = scmp.ne.s32.totalorder %s53, %s67
      %p69 = scmp.eq.s32.totalorder %s22, 0
      %p70 = por %p68, %p69
      %s72 = sadd.s32 %s71, 1
      %p75 = scmp.eq.s32.totalorder %s16, 1
      %p76 = scmp.ne.s32.totalorder %s71, %s73
      %p77 = scmp.eq.s32.totalorder %s16, 0
      %p78 = por %p76, %p77
      %p79 = scmp.ne.s32.totalorder %s71, %s73
      %p80 = scmp.eq.s32.totalorder %s21, 1
      %p81 = por %p79, %p80
      %p82 = scmp.ne.s32.totalorder %s73, %s74
      %p83 = scmp.eq.s32.totalorder %s21, 0
      %p84 = por %p82, %p83
      %p85 = scmp.ne.s32.totalorder %s73, %s74
      %p86 = scmp.eq.s32.totalorder %s22, 1
      %p87 = por %p85, %p86
      %p89 = scmp.ne.s32.totalorder %s74, %s88
      %p90 = scmp.eq.s32.totalorder %s22, 0
      %p91 = por %p89, %p90
      %s92 = ssub.s32 %s16, %s23
      %p93 = scmp.eq.s32.totalorder %s92, 0
      %s95 = sadd.s32 %s94, 1
      %s96 = scalar_select %p93, %s94, %s95
      %p99 = pneg %p93
      %p100 = scmp.eq.s32.totalorder %s16, 1
      %p101 = por %p99, %p100
      %p102 = scmp.ne.s32.totalorder %s94, %s97
      %p103 = scmp.eq.s32.totalorder %s16, 0
      %p104 = por %p102, %p103
      %p105 = scmp.ne.s32.totalorder %s94, %s97
      %p106 = scmp.eq.s32.totalorder %s21, 1
      %p107 = por %p105, %p106
      %p108 = scmp.ne.s32.totalorder %s97, %s98
      %p109 = scmp.eq.s32.totalorder %s21, 0
      %p110 = por %p108, %p109
      %p111 = scmp.ne.s32.totalorder %s97, %s98
      %p112 = scmp.eq.s32.totalorder %s22, 1
      %p113 = por %p111, %p112
      %p115 = scmp.ne.s32.totalorder %s98, %s114
      %p116 = scmp.eq.s32.totalorder %s22, 0
      %p117 = por %p115, %p116
      %p118 = scmp.le.s32.totalorder 1, %s16
      %p119 = scmp.lt.s32.totalorder %s16, 3
      %p120 = pnand %p118, %p119
      %p121 = pneg %p120
      // Predicated region
      $region9: #{tpu_custom_call.1} parent=5 // pred_check
        _
      $region10: #{tpu_custom_call.1} parent=5 // pred_check_branch
        %123 = sbr.rel (%p120) target = $region12
      $region11: #{tpu_custom_call.1} parent=5 // pred_region
        %s124 = ssub.s32 %s16, 1
        // Predicated region
        $region13: #{tpu_custom_call.1} parent=11 // pred_check
          %p125 = pneg %p63
        $region14: #{tpu_custom_call.1} parent=11 // pred_check_branch
          %127 = sbr.rel (%p125) target = $region16
        $region15: #{tpu_custom_call.1} parent=11 // pred_region
          %s129 = ssub.s32 2048, 2048
          %130 = vsyncadd [#allocation6], %s129
          %s131 = sshll.u32 [#allocation5], 4
          %s132 = int_to_ptr.vmem [resolvable:$true] %s131
          %137 = dma.hbm_to_vmem [thread:$0]  %s1, 2048, %s132, [#allocation6], 128, 128, 8
        $region16: #{tpu_custom_call.1} parent=11 // pred_fallthru
          _
        // Predicated region
        $region17: #{tpu_custom_call.1} parent=11 // pred_check
          %p138 = pneg %p84
        $region18: #{tpu_custom_call.1} parent=11 // pred_check_branch
          %140 = sbr.rel (%p138) target = $region20
        $region19: #{tpu_custom_call.1} parent=11 // pred_region
          _
        $region20: #{tpu_custom_call.1} parent=11 // pred_fallthru
          _
      $region12: #{tpu_custom_call.1} parent=5 // pred_fallthru
        _
      %p141 = scmp.lt.s32.totalorder %s16, 2
      // Predicated region
      $region21: #{tpu_custom_call.1} parent=5 // pred_check
        %p142 = pneg %p141
      $region22: #{tpu_custom_call.1} parent=5 // pred_check_branch
        %144 = sbr.rel (%p142) target = $region24
      $region23: #{tpu_custom_call.1} parent=5 // pred_region
        // Predicated region
        $region25: #{tpu_custom_call.1} parent=23 // pred_check
          %p145 = pneg %p36
        $region26: #{tpu_custom_call.1} parent=23 // pred_check_branch
          %147 = sbr.rel (%p145) target = $region28
        $region27: #{tpu_custom_call.1} parent=23 // pred_region
          %s148 = sand.u32 %s26, 1
          %s149 = scalar_lea.sflag [#allocation3], %s148
          %s150 = sand.u32 %s26, 1
          %s151 = smul.addr %s150, 8
          %s152 = scalar_lea.vmem [#allocation2], %s151
          %s154 = ssub.s32 128, 128
          %155 = vsyncadd %s149, %s154
          %s156 = smul.addr %s16, 128
          %s157 = scalar_lea.hbm %s0, %s156
          %s159 = sshll.u32 %s152, 4
          %s160 = int_to_ptr.vmem [resolvable:$true] %s159
          %162 = dma.hbm_to_vmem [thread:$0]  %s157, 128, %s160, %s149
        $region28: #{tpu_custom_call.1} parent=23 // pred_fallthru
          _
      $region24: #{tpu_custom_call.1} parent=5 // pred_fallthru
        _
      %p163 = scmp.le.s32.totalorder 1, %s16
      %p164 = scmp.lt.s32.totalorder %s16, 3
      %p165 = pnand %p163, %p164
      %p166 = pneg %p165
      // Predicated region
      $region29: #{tpu_custom_call.1} parent=5 // pred_check
        _
      $region30: #{tpu_custom_call.1} parent=5 // pred_check_branch
        %168 = sbr.rel (%p165) target = $region32
      $region31: #{tpu_custom_call.1} parent=5 // pred_region
        %s169 = ssub.s32 %s16, 1
        %s170 = sand.u32 %s29, 1
        %s171 = scalar_lea.sflag [#allocation3], %s170
        %s172 = sand.u32 %s29, 1
        %s173 = smul.addr %s172, 8
        %s174 = scalar_lea.vmem [#allocation2], %s173
        // Predicated region
        $region33: #{tpu_custom_call.1} parent=31 // pred_check
          %p175 = pneg %p42
        $region34: #{tpu_custom_call.1} parent=31 // pred_check_branch
          %177 = sbr.rel (%p175) target = $region36
        $region35: #{tpu_custom_call.1} parent=31 // pred_region
          %178 = dma.done %s171, 128
        $region36: #{tpu_custom_call.1} parent=31 // pred_fallthru
          _
        // Predicated region
        $region37: #{tpu_custom_call.1} parent=31 // pred_check
          %p179 = pneg %p63
        $region38: #{tpu_custom_call.1} parent=31 // pred_check_branch
          %181 = sbr.rel (%p179) target = $region40
        $region39: #{tpu_custom_call.1} parent=31 // pred_region
          %182 = dma.done [#allocation6], 2048
        $region40: #{tpu_custom_call.1} parent=31 // pred_fallthru
          _
        %s183 = sand.u32 %s29, 1
        %s184 = scalar_lea.sflag [#allocation3], %s183
        %s185 = sand.u32 %s29, 1
        %s186 = smul.addr %s185, 8
        %s187 = scalar_lea.vmem [#allocation2], %s186
        %p188 = pneg %p42
        %p189 = pneg %p39
        %p190 = pneg %p63
        %p191 = pneg %p60
        %p192 = pneg %p84
        %p193 = pneg %p81
        %p194 = pneg %p110
        %p195 = pneg %p107
        %s196 = sand.u32 %s97, 1
        %s197 = scalar_lea.sflag [#allocation4], %s196
        %s198 = sand.u32 %s97, 1
        %s199 = smul.addr %s198, 8
        %s200 = scalar_lea.vmem [#allocation7], %s199
        %v201 = vld [vmem:[%s174] sm:$0xff]
        %v202 = vld [vmem:[#allocation5] sm:$0xff]
        %v203 = vld [vmem:[#allocation5 + $0x8] sm:$0xff]
        %v204 = vld [vmem:[#allocation5 + $0x10] sm:$0xff]
        %v205 = vld [vmem:[#allocation5 + $0x18] sm:$0xff]
        %v206 = vld [vmem:[#allocation5 + $0x20] sm:$0xff]
        %v207 = vld [vmem:[#allocation5 + $0x28] sm:$0xff]
        %v208 = vld [vmem:[#allocation5 + $0x30] sm:$0xff]
        %v209 = vld [vmem:[#allocation5 + $0x38] sm:$0xff]
        %v210 = vld [vmem:[#allocation5 + $0x40] sm:$0xff]
        %v211 = vld [vmem:[#allocation5 + $0x48] sm:$0xff]
        %v212 = vld [vmem:[#allocation5 + $0x50] sm:$0xff]
        %v213 = vld [vmem:[#allocation5 + $0x58] sm:$0xff]
        %v214 = vld [vmem:[#allocation5 + $0x60] sm:$0xff]
        %v215 = vld [vmem:[#allocation5 + $0x68] sm:$0xff]
        %v216 = vld [vmem:[#allocation5 + $0x70] sm:$0xff]
        %v217 = vld [vmem:[#allocation5 + $0x78] sm:$0xff]
        %218 = vmatprep.subr.mxu0 0.0
        %219 = vmatpush1.msra.mxu0 %v202
        %220 = vmatprep.subr.mxu0 0.0
        %221 = vmatpush1.msra.mxu0 %v203
        %222 = vmatprep.subr.mxu0 0.0
        %223 = vmatpush1.msra.mxu0 %v204
        %224 = vmatprep.subr.mxu0 0.0
        %225 = vmatpush1.msra.mxu0 %v205
        %226 = vmatprep.subr.mxu0 0.0
        %227 = vmatpush1.msra.mxu0 %v206
        %228 = vmatprep.subr.mxu0 0.0
        %229 = vmatpush1.msra.mxu0 %v207
        %230 = vmatprep.subr.mxu0 0.0
        %231 = vmatpush1.msra.mxu0 %v208
        %232 = vmatprep.subr.mxu0 0.0
        %233 = vmatpush1.msra.mxu0 %v209
        %234 = vmatprep.subr.mxu0 0.0
        %235 = vmatpush1.msra.mxu0 %v210
        %236 = vmatprep.subr.mxu0 0.0
        %237 = vmatpush1.msra.mxu0 %v211
        %238 = vmatprep.subr.mxu0 0.0
        %239 = vmatpush1.msra.mxu0 %v212
        %240 = vmatprep.subr.mxu0 0.0
        %241 = vmatpush1.msra.mxu0 %v213
        %242 = vmatprep.subr.mxu0 0.0
        %243 = vmatpush1.msra.mxu0 %v214
        %244 = vmatprep.subr.mxu0 0.0
        %245 = vmatpush1.msra.mxu0 %v215
        %246 = vmatprep.subr.mxu0 0.0
        %247 = vmatpush1.msra.mxu0 %v216
        %248 = vmatprep.subr.mxu0 0.0
        %249 = vmatpush1.msra.mxu0 %v217
        %250 = vmatprep.subr.mxu0 0.0
        %251 = vmatpush1.msra.mxu0 0.0
        %252 = vmatprep.subr.mxu0 0.0
        %253 = vmatpush1.msra.mxu0 0.0
        %254 = vmatprep.subr.mxu0 0.0
        %255 = vmatpush1.msra.mxu0 0.0
        %256 = vmatprep.subr.mxu0 0.0
        %257 = vmatpush1.msra.mxu0 0.0
        %258 = vmatprep.subr.mxu0 0.0
        %259 = vmatpush1.msra.mxu0 0.0
        %260 = vmatprep.subr.mxu0 0.0
        %261 = vmatpush1.msra.mxu0 0.0
        %262 = vmatprep.subr.mxu0 0.0
        %263 = vmatpush1.msra.mxu0 0.0
        %264 = vmatprep.subr.mxu0 0.0
        %265 = vmatpush1.msra.mxu0 0.0
        %266 = vmatprep.subr.mxu0 0.0
        %267 = vmatpush1.msra.mxu0 0.0
        %268 = vmatprep.subr.mxu0 0.0
        %269 = vmatpush1.msra.mxu0 0.0
        %270 = vmatprep.subr.mxu0 0.0
        %271 = vmatpush1.msra.mxu0 0.0
        %272 = vmatprep.subr.mxu0 0.0
        %273 = vmatpush1.msra.mxu0 0.0
        %274 = vmatprep.subr.mxu0 0.0
        %275 = vmatpush1.msra.mxu0 0.0
        %276 = vmatprep.subr.mxu0 0.0
        %277 = vmatpush1.msra.mxu0 0.0
        %278 = vmatprep.subr.mxu0 0.0
        %279 = vmatpush1.msra.mxu0 0.0
        %280 = vmatprep.subr.mxu0 0.0
        %281 = vmatpush1.msra.mxu0 0.0
        %282 = vmatprep.mubr.f32.mxu0 0.0
        %283 = vmatmul.mubr.f32.gmra.mrb[0].mxu0 %v201
        %v284 = vpop.f32.mrb[0].mxu0
        %v285 = vadd.f32 0.0, %v284
        %v286 = vpop.f32.mrb[0].mxu0
        %287 = vdwg.mxu0
        %288 = vadd.xlane.f32.xlu0 %v285
        %v289 = vpop.xlane.xlu0 %288
        %v290 = vmul.f32 %v289, 0.0078125
        %v291 = vsub.f32 %v285, %v290
        %v292 = vmul.f32 %v291, %v291
        %293 = vadd.xlane.f32.xlu0 %v292
        %v294 = vpop.xlane.xlu0 %293
        %v295 = vmul.f32 %v294, 0.0078125
        %v296 = vadd.f32 %v295, 1e-05
        %v297 = vrsqrt.pop %v296
        %v298 = vld [vmem:[%s2] sm:$0x1]
        %v299 = vld [vmem:[%s2 + $0x1] sm:$0x1]
        %v300 = vmul.f32 %v291, %v297
        %v301 = vlaneseq
        %v302 = vshrl.u32 %v301, 7
        %v303 = vsub.s32 0, %v302
        %v304 = vrot.slane %v298, %v303
        %v305 = vmul.f32 %v300, %v304
        %v306 = vlaneseq
        %v307 = vshrl.u32 %v306, 7
        %v308 = vsub.s32 0, %v307
        %v309 = vrot.slane %v299, %v308
        %v310 = vadd.f32 %v305, %v309
        %311 = vst [vmem:[%s200] sm:$0xff] %v310
        %s312 = sand.u32 %s97, 1
        %s313 = scalar_lea.sflag [#allocation4], %s312
        %s314 = sand.u32 %s97, 1
        %s315 = smul.addr %s314, 8
        %s316 = scalar_lea.vmem [#allocation7], %s315
        // Predicated region
        $region41: #{tpu_custom_call.1} parent=31 // pred_check
          %p317 = pneg %p107
        $region42: #{tpu_custom_call.1} parent=31 // pred_check_branch
          %319 = sbr.rel (%p317) target = $region44
        $region43: #{tpu_custom_call.1} parent=31 // pred_region
          %s321 = ssub.s32 128, 128
          %322 = vsyncadd %s313, %s321
          %s323 = smul.addr %s21, 128
          %s324 = scalar_lea.hbm %s3, %s323
          %s326 = sshll.u32 %s316, 4
          %s327 = int_to_ptr.vmem [resolvable:$true] %s326
          %329 = dma.vmem_to_hbm [thread:$0]  %s327, 128, %s324, %s313
        $region44: #{tpu_custom_call.1} parent=31 // pred_fallthru
          _
      $region32: #{tpu_custom_call.1} parent=5 // pred_fallthru
        _
      %p330 = scmp.le.s32.totalorder 2, %s16
      // Predicated region
      $region45: #{tpu_custom_call.1} parent=5 // pred_check
        %p331 = pneg %p330
      $region46: #{tpu_custom_call.1} parent=5 // pred_check_branch
        %333 = sbr.rel (%p331) target = $region48
      $region47: #{tpu_custom_call.1} parent=5 // pred_region
        %s334 = ssub.s32 %s16, 2
        // Predicated region
        $region49: #{tpu_custom_call.1} parent=47 // pred_check
          %p335 = pneg %p113
        $region50: #{tpu_custom_call.1} parent=47 // pred_check_branch
          %337 = sbr.rel (%p335) target = $region52
        $region51: #{tpu_custom_call.1} parent=47 // pred_region
          %s338 = sand.u32 %s98, 1
          %s339 = scalar_lea.sflag [#allocation4], %s338
          %s340 = sand.u32 %s98, 1
          %s341 = smul.addr %s340, 8
          %s342 = scalar_lea.vmem [#allocation7], %s341
          %343 = dma.done %s339, 128
        $region52: #{tpu_custom_call.1} parent=47 // pred_fallthru
          _
      $region48: #{tpu_custom_call.1} parent=5 // pred_fallthru
        _
    $region6: #{tpu_custom_call.1} parent=1 // loop_footer
      %s20 = sadd.s32 1, %s16
    $region7: #{tpu_custom_call.1} parent=1 // loop_footer_branch
      %15 = sbr.rel target = $region3
    $region8: #{tpu_custom_call.1} parent=1 // loop_exit
      _
    %344 = vsyncpa [#allocation3], 1
    %s345 = scalar_lea.sflag [#allocation3], 1
    %346 = vsyncpa %s345, 1
    %347 = vsyncpa [#allocation6], 1
    %348 = vsyncpa [#allocation4], 1
    %s349 = scalar_lea.sflag [#allocation4], 1
    %350 = vsyncpa %s349, 1

</llo_original>
